<compile_context>
chip_gen: v5e
topology: v5e:2x2
jax: 0.10.0
libtpu: 0.0.40
codegen_flags: <defaults>
</compile_context>

<pallas_src>
import math

import numpy as np

import jax
import jax.numpy as jnp
from jax.experimental import pallas as pl
from jax.experimental.pallas import tpu as pltpu  # noqa: F401  (TPU-specific tuning hooks)


# ---------------------------------------------------------------------------
# Hyper-parameters (module defaults at small test size)
# ---------------------------------------------------------------------------
B = 2                      # batch (number of timesteps)
HIDDEN = 32                # hidden_size
FREQ_DIM = 256             # frequency_embedding_size
HALF = FREQ_DIM // 2       # 128 (one full lane width -> native K for the MXU)
MAX_PERIOD = 1000.0        # NOTE: this module uses max_period=1000 (not DiT's 10000)

# Compile-time constant: freqs[k] = exp(-log(max_period) * k / half), (1, HALF).
_FREQS = np.exp(
    -math.log(MAX_PERIOD) * np.arange(HALF, dtype=np.float32) / HALF
).reshape(1, HALF)


# ---------------------------------------------------------------------------
# Fused kernel: sinusoidal embedding + (Linear -> SiLU -> Linear)
# ---------------------------------------------------------------------------
def timestep_embedder_kernel(t_ref, freqs_ref, w1_ref, w2_ref, b_ref, out_ref):
    """
    t_ref:     (B, 1)        f32 timesteps
    freqs_ref: (1, HALF)     f32 precomputed frequencies
    w1_ref:    (FREQ_DIM, H) bf16 first-layer weight (sliced in-kernel at HALF)
    w2_ref:    (H, H)        bf16 second-layer weight
    b_ref:     (2, H)        f32 packed biases (row 0 = b1, row 1 = b2)
    out_ref:   (B, H)        f32 output
    """
    args = t_ref[...] * freqs_ref[...]                          # (B, HALF) f32

    # embedding = concat([cos(args), sin(args)], -1); the lane-axis concat is
    # folded into the first matmul by splitting W1 at the 128-lane boundary:
    #   emb @ W1 == cos(args) @ W1[:HALF] + sin(args) @ W1[HALF:]
    cos_a = jnp.cos(args).astype(jnp.bfloat16)
    sin_a = jnp.sin(args).astype(jnp.bfloat16)

    h = (jnp.dot(cos_a, w1_ref[:HALF, :], preferred_element_type=jnp.float32)
         + jnp.dot(sin_a, w1_ref[HALF:, :], preferred_element_type=jnp.float32)
         + b_ref[0:1, :])                                       # + b1
    h = h * jax.nn.sigmoid(h)                                   # SiLU (f32)

    out_ref[...] = (jnp.dot(h.astype(jnp.bfloat16), w2_ref[...],
                            preferred_element_type=jnp.float32)
                    + b_ref[1:2, :])                            # + b2


# ---------------------------------------------------------------------------
# Wrapper
# ---------------------------------------------------------------------------
def timestep_embedder(params, t):
    """t: (B,) scalar timesteps (possibly fractional) -> (B, HIDDEN) embedding."""
    t2 = t.astype(jnp.float32).reshape(-1, 1)                   # (B, 1)
    n = t2.shape[0]
    h = params["w2"].shape[-1]

    freqs = jnp.asarray(_FREQS)                                 # constant under jit

    # FREQ_DIM=256 is even, so the reference's `if dim % 2` zero-pad branch is
    # statically dead (it would be a wrapper-side pad of W1 if ever needed).

    # Advisory cost estimate so the XLA scheduler can overlap this tiny call.
    flops = 2 * n * FREQ_DIM * h + 2 * n * h * h + 6 * n * h
    transcendentals = 2 * n * HALF + n * h                      # cos, sin, sigmoid
    bytes_accessed = (t2.size * 4 + freqs.size * 4
                      + params["w1"].size * 2 + params["w2"].size * 2
                      + params["b12"].size * 4 + n * h * 4)

    return pl.pallas_call(
        timestep_embedder_kernel,
        out_shape=jax.ShapeDtypeStruct((n, h), jnp.float32),
        cost_estimate=pl.CostEstimate(
            flops=flops,
            transcendentals=transcendentals,
            bytes_accessed=bytes_accessed,
        ),
    )(t2, freqs, params["w1"], params["w2"], params["b12"])


# ---------------------------------------------------------------------------
# Pure-JAX reference (direct translation of the PyTorch module, f32 math on the
# same bf16-stored weights)
# ---------------------------------------------------------------------------
def timestep_embedder_ref(params, t):
    w1 = params["w1"].astype(jnp.float32)
    w2 = params["w2"].astype(jnp.float32)
    b1 = params["b12"][0:1].astype(jnp.float32)
    b2 = params["b12"][1:2].astype(jnp.float32)

    freqs = jnp.exp(-math.log(MAX_PERIOD)
                    * jnp.arange(HALF, dtype=jnp.float32) / HALF)
    args = t.astype(jnp.float32)[:, None] * freqs[None]
    emb = jnp.concatenate([jnp.cos(args), jnp.sin(args)], axis=-1)   # (B, 256)
    h = emb @ w1 + b1
    h = h * jax.nn.sigmoid(h)                                        # SiLU
    return h @ w2 + b2


# ---------------------------------------------------------------------------
# Deterministic synthetic parameter init
#   weights stored (in_features, out_features) in bf16; biases packed (2, H) f32
# ---------------------------------------------------------------------------
def init_params(key):
    k1, k2, k3, k4 = jax.random.split(key, 4)
    w1 = (0.1 * jax.random.normal(k1, (FREQ_DIM, HIDDEN))).astype(jnp.bfloat16)
    w2 = (0.1 * jax.random.normal(k3, (HIDDEN, HIDDEN))).astype(jnp.bfloat16)
    b1 = (0.01 * jax.random.normal(k2, (1, HIDDEN))).astype(jnp.float32)
    b2 = (0.01 * jax.random.normal(k4, (1, HIDDEN))).astype(jnp.float32)
    return {"w1": w1, "w2": w2, "b12": jnp.concatenate([b1, b2], axis=0)}


if __name__ == "__main__":
    key = jax.random.PRNGKey(0)
    kt, kp = jax.random.split(key, 2)

    # Fractional timesteps in [0, 999), one per batch element.
    t = jax.random.uniform(kt, (B,), dtype=jnp.float32) * 999.0
    params = init_params(kp)

    out = jax.jit(timestep_embedder)(params, t)
    out = jax.block_until_ready(out)

    assert out.shape == (B, HIDDEN), out.shape
    assert bool(jnp.all(jnp.isfinite(out)))

    ref = timestep_embedder_ref(params, t)
    assert bool(jnp.allclose(out, ref, rtol=1e-2, atol=1e-2)), (
        float(jnp.max(jnp.abs(out - ref))))

    print("KERNEL_OK")
</pallas_src>

<mosaic_0001>
module attributes {stable_mosaic.version = 11 : i64} {
  func.func @timestep_embedder_kernel(%arg0: memref<2x1xf32, #tpu.memory_space<vmem>>, %arg1: memref<1x128xf32, #tpu.memory_space<vmem>>, %arg2: memref<256x32xbf16, #tpu.memory_space<vmem>>, %arg3: memref<32x32xbf16, #tpu.memory_space<vmem>>, %arg4: memref<2x32xf32, #tpu.memory_space<vmem>>, %arg5: memref<2x32xf32, #tpu.memory_space<vmem>>) attributes {dimension_semantics = [], scalar_prefetch = 0 : i64, scratch_operands = 0 : i64, tpu.core_type = #tpu.core_type<tc>} {
    %c0 = arith.constant 0 : index
    %c0_0 = arith.constant 0 : index
    %0 = vector.load %arg0[%c0, %c0_0] : memref<2x1xf32, #tpu.memory_space<vmem>>, vector<2x1xf32>
    %c0_1 = arith.constant 0 : index
    %c0_2 = arith.constant 0 : index
    %1 = vector.load %arg1[%c0_1, %c0_2] : memref<1x128xf32, #tpu.memory_space<vmem>>, vector<1x128xf32>
    %2 = vector.broadcast %0 : vector<2x1xf32> to vector<2x128xf32>
    %3 = vector.broadcast %1 : vector<1x128xf32> to vector<2x128xf32>
    %4 = arith.mulf %2, %3 : vector<2x128xf32>
    %5 = math.cos %4 : vector<2x128xf32>
    %6 = arith.truncf %5 : vector<2x128xf32> to vector<2x128xbf16>
    %7 = math.sin %4 : vector<2x128xf32>
    %8 = arith.truncf %7 : vector<2x128xf32> to vector<2x128xbf16>
    %c0_3 = arith.constant 0 : index
    %c0_4 = arith.constant 0 : index
    %9 = vector.load %arg2[%c0_3, %c0_4] : memref<256x32xbf16, #tpu.memory_space<vmem>>, vector<128x32xbf16>
    %cst = arith.constant dense<0.000000e+00> : vector<2x32xf32>
    %10 = tpu.matmul %6, %9, %cst {dimension_numbers = #tpu.dot_dimension_numbers<[1], [0], [0], [1], [0, 0, 1, 1], [], []>} : vector<2x128xbf16>, vector<128x32xbf16>, vector<2x32xf32> -> vector<2x32xf32>
    %c128 = arith.constant 128 : index
    %c0_5 = arith.constant 0 : index
    %11 = vector.load %arg2[%c128, %c0_5] : memref<256x32xbf16, #tpu.memory_space<vmem>>, vector<128x32xbf16>
    %cst_6 = arith.constant dense<0.000000e+00> : vector<2x32xf32>
    %12 = tpu.matmul %8, %11, %cst_6 {dimension_numbers = #tpu.dot_dimension_numbers<[1], [0], [0], [1], [0, 0, 1, 1], [], []>} : vector<2x128xbf16>, vector<128x32xbf16>, vector<2x32xf32> -> vector<2x32xf32>
    %13 = arith.addf %10, %12 : vector<2x32xf32>
    %c0_7 = arith.constant 0 : index
    %c0_8 = arith.constant 0 : index
    %14 = vector.load %arg4[%c0_7, %c0_8] : memref<2x32xf32, #tpu.memory_space<vmem>>, vector<1x32xf32>
    %15 = vector.broadcast %14 : vector<1x32xf32> to vector<2x32xf32>
    %16 = arith.addf %13, %15 : vector<2x32xf32>
    %17 = arith.negf %16 : vector<2x32xf32>
    %18 = math.exp %17 : vector<2x32xf32>
    %cst_9 = arith.constant 1.000000e+00 : f32
    %19 = vector.broadcast %cst_9 : f32 to vector<2x32xf32>
    %20 = arith.addf %19, %18 : vector<2x32xf32>
    %21 = arith.divf %19, %20 : vector<2x32xf32>
    %22 = arith.mulf %16, %21 : vector<2x32xf32>
    %23 = arith.truncf %22 : vector<2x32xf32> to vector<2x32xbf16>
    %c0_10 = arith.constant 0 : index
    %c0_11 = arith.constant 0 : index
    %24 = vector.load %arg3[%c0_10, %c0_11] : memref<32x32xbf16, #tpu.memory_space<vmem>>, vector<32x32xbf16>
    %cst_12 = arith.constant dense<0.000000e+00> : vector<2x32xf32>
    %25 = tpu.matmul %23, %24, %cst_12 {dimension_numbers = #tpu.dot_dimension_numbers<[1], [0], [0], [1], [0, 0, 1, 1], [], []>} : vector<2x32xbf16>, vector<32x32xbf16>, vector<2x32xf32> -> vector<2x32xf32>
    %c1 = arith.constant 1 : index
    %c0_13 = arith.constant 0 : index
    %26 = vector.load %arg4[%c1, %c0_13] : memref<2x32xf32, #tpu.memory_space<vmem>>, vector<1x32xf32>
    %27 = vector.broadcast %26 : vector<1x32xf32> to vector<2x32xf32>
    %28 = arith.addf %25, %27 : vector<2x32xf32>
    %c0_14 = arith.constant 0 : index
    %c0_15 = arith.constant 0 : index
    %29 = vector.load %arg5[%c0_14, %c0_15] : memref<2x32xf32, #tpu.memory_space<vmem>>, vector<2x32xf32>
    tpu.vector_store %arg5[%c0_14, %c0_15], %28 {strides = array<i32>} : memref<2x32xf32, #tpu.memory_space<vmem>>, vector<2x32xf32>,
    return
  }
}

</mosaic_0001>

<llo_original>
// kernel: timestep_embedder.1
$region0: #{timestep_embedder.1}
  #allocation0 [shape = 'u32[]', space=smem, size = 0x4, offset = 0x4, fixed_abs, tag = 'smem constant byte address 0x4 - core index']
  #allocation1 [shape = 'u32[72,128]{1,0:T(1,128)}', space=vmem, size = 0x9000, scoped, tag = 'internal scratch']
  %s0 = inlined_call_operand.vmem [shape: f32[2,1], index: 0, kind: input, shape index: {}]
  %s1 = inlined_call_operand.vmem [shape: f32[1,128], index: 1, kind: input, shape index: {}]
  %s2 = inlined_call_operand.vmem [shape: bf16[256,32], index: 2, kind: input, shape index: {}]
  %s3 = inlined_call_operand.vmem [shape: bf16[32,32], index: 3, kind: input, shape index: {}]
  %s4 = inlined_call_operand.vmem [shape: f32[2,32], index: 4, kind: input, shape index: {}]
  %s5 = inlined_call_operand.hbm [shape: f32[2,32], index: 5, kind: output, shape index: {}]
  %s6 = sld [smem:[#allocation0]]
  $region30: #{timestep_embedder.1} parent=0
    _
  %s8 = ssub.s32 1, %s6
  %s9 = scalar_select 0, %s8, %s6
  $region1: #{timestep_embedder.1} parent=0
    #allocation2 [shape = 'u8[1024]{0}', space=vmem, size = 0x400, scoped, tag = 'output window, operand 0, single buffered']
    #allocation3 [shape = 's32[1]{0}', space=sflag, size = 0x4, scoped, tag = 'scoped memory for timestep_embedder.1']
    %10 = vsyncpa [#allocation3], 0
    // Predicated region
    $region2: #{timestep_embedder.1} parent=1 // pred_check
      _
    $region3: #{timestep_embedder.1} parent=1 // pred_check_branch
      %12 = sbr.rel (0) target = $region5
    $region4: #{timestep_embedder.1} parent=1 // pred_region
      _
    $region5: #{timestep_embedder.1} parent=1 // pred_fallthru
      _
    // Predicated region
    $region6: #{timestep_embedder.1} parent=1 // pred_check
      _
    $region7: #{timestep_embedder.1} parent=1 // pred_check_branch
      %14 = sbr.rel (0) target = $region9
    $region8: #{timestep_embedder.1} parent=1 // pred_region
      _
    $region9: #{timestep_embedder.1} parent=1 // pred_fallthru
      _
    // Predicated region
    $region10: #{timestep_embedder.1} parent=1 // pred_check
      _
    $region11: #{timestep_embedder.1} parent=1 // pred_check_branch
      %16 = sbr.rel (0) target = $region13
    $region12: #{timestep_embedder.1} parent=1 // pred_region
      _
    $region13: #{timestep_embedder.1} parent=1 // pred_fallthru
      _
    // Predicated region
    $region14: #{timestep_embedder.1} parent=1 // pred_check
      _
    $region15: #{timestep_embedder.1} parent=1 // pred_check_branch
      %18 = sbr.rel (0) target = $region17
    $region16: #{timestep_embedder.1} parent=1 // pred_region
      _
    $region17: #{timestep_embedder.1} parent=1 // pred_fallthru
      _
    // Predicated region
    $region18: #{timestep_embedder.1} parent=1 // pred_check
      _
    $region19: #{timestep_embedder.1} parent=1 // pred_check_branch
      %20 = sbr.rel (0) target = $region21
    $region20: #{timestep_embedder.1} parent=1 // pred_region
      _
    $region21: #{timestep_embedder.1} parent=1 // pred_fallthru
      _
    %v22 = vld [vmem:[%s0] sm:$0x3]
    %v23 = vld [vmem:[%s1] sm:$0x1]
    %25 = vset.pattern.permute.xlu0 0
    %26 = vperm.xlu0 %25, %v22
    %v27 = vpop.permute.xlu0 %26
    %v30 = vperm.slane %v23, 0
    %v32 = vmul.f32 %v27, %v30
    %v33 = vand.u32 2147483647, %v32
    %vm34 = vcmp.le.f32.partialorder %v33, 0.7853982
    %vm35 = vcmp.lt.s32.totalorder %v32, 0
    %v36 = vand.u32 %v32, 2139095040
    %v37 = vshrl.u32 %v36, 23
    %v38 = vsub.s32 %v37, 127
    %v39 = vand.u32 2147483647, %v32
    %v40 = vand.u32 %v39, 8388607
    %v41 = vor.u32 %v40, 8388608
    %v42 = vsub.s32 0, %v41
    %v43 = vadd.s32 %v38, 1
    %vm44 = vcmp.gt.s32.totalorder %v43, 0
    %v45 = vsel %vm44, %v43, 0
    %v46 = vshrl.u32 %v45, 5
    %v47 = vand.u32 %v45, 31
    %v48 = vsub.s32 32, %v47
    %v49 = vshrl.u32 683565275, %v48
    %v50 = vshll.u32 683565275, %v47
    %v51 = vshrl.u32 2475754826, %v48
    %v52 = vor.u32 %v50, %v51
    %v53 = vshll.u32 2475754826, %v47
    %v54 = vshrl.u32 2131351028, %v48
    %v55 = vor.u32 %v53, %v54
    %v56 = vshll.u32 2131351028, %v47
    %v57 = vshrl.u32 2102212464, %v48
    %v58 = vor.u32 %v56, %v57
    %v59 = vshll.u32 2102212464, %v47
    %v60 = vshrl.u32 920167782, %v48
    %v61 = vor.u32 %v59, %v60
    %v62 = vshll.u32 920167782, %v47
    %v63 = vshrl.u32 1326507024, %v48
    %v64 = vor.u32 %v62, %v63
    %vm65 = vcmp.lt.s32.totalorder %v46, 1
    %vm66 = vcmp.lt.s32.totalorder %v46, 2
    %vm67 = vcmp.lt.s32.totalorder %v46, 3
    %vm68 = vcmp.lt.s32.totalorder %v46, 4
    %v69 = vsel %vm65, %v49, %v52
    %v70 = vsel %vm68, %v58, 2102212464
    %v71 = vsel %vm67, %v55, %v70
    %v72 = vsel %vm66, %v69, %v71
    %v73 = vsel %vm65, %v52, %v55
    %v74 = vsel %vm68, %v61, 920167782
    %v75 = vsel %vm67, %v58, %v74
    %v76 = vsel %vm66, %v73, %v75
    %v77 = vsel %vm65, %v55, %v58
    %v78 = vsel %vm68, %v64, 1326507024
    %v79 = vsel %vm67, %v61, %v78
    %v80 = vsel %vm66, %v77, %v79
    %v81 = vshll.u32 %v41, 8
    %v82 = vand.u32 %v81, 65535
    %v83 = vshrl.u32 %v81, 16
    %v84 = vand.u32 %v80, 65535
    %v85 = vshrl.u32 %v80, 16
    %v86 = vmul.u32 %v82, %v84
    %v87 = vmul.u32 %v82, %v85
    %v88 = vmul.u32 %v83, %v84
    %v89 = vmul.u32 %v83, %v85
    %v90 = vshll.u32 %v87, 16
    %v91 = vshrl.u32 %v87, 16
    %v92 = vshll.u32 %v88, 16
    %v93 = vshrl.u32 %v88, 16
    %vm94 = vc.u32 %v86, %v90
    %v95 = vsel %vm94, 1, 0
    %v96 = vadd.s32 %v86, %v90
    %v97 = vadd.s32 %v89, %v95
    %vm98 = vc.u32 %v96, %v92
    %v99 = vsel %vm98, 1, 0
    %v100 = vadd.s32 %v96, %v92
    %v101 = vadd.s32 %v97, %v99
    %v102 = vadd.s32 %v101, %v91
    %v103 = vadd.s32 %v102, %v93
    %v104 = vand.u32 %v81, 65535
    %v105 = vshrl.u32 %v81, 16
    %v106 = vand.u32 %v76, 65535
    %v107 = vshrl.u32 %v76, 16
    %v108 = vmul.u32 %v104, %v106
    %v109 = vmul.u32 %v104, %v107
    %v110 = vmul.u32 %v105, %v106
    %v111 = vmul.u32 %v105, %v107
    %v112 = vshll.u32 %v109, 16
    %v113 = vshrl.u32 %v109, 16
    %v114 = vshll.u32 %v110, 16
    %v115 = vshrl.u32 %v110, 16
    %vm116 = vc.u32 %v108, %v112
    %v117 = vsel %vm116, 1, 0
    %v118 = vadd.s32 %v108, %v112
    %v119 = vadd.s32 %v111, %v117
    %vm120 = vc.u32 %v118, %v114
    %v121 = vsel %vm120, 1, 0
    %v122 = vadd.s32 %v118, %v114
    %v123 = vadd.s32 %v119, %v121
    %v124 = vadd.s32 %v123, %v113
    %v125 = vadd.s32 %v124, %v115
    %v126 = vmul.u32 %v81, %v72
    %v127 = vadd.s32 %v103, %v122
    %vm128 = vc.u32 %v103, %v122
    %v129 = vadd.s32 %v125, 1
    %v130 = vsel %vm128, %v129, %v125
    %v131 = vadd.s32 %v126, %v130
    %v132 = vadd.s32 %v131, 536870912
    %v133 = vshrl.u32 %v132, 30
    %v134 = vshll.u32 %v133, 30
    %v135 = vsub.s32 %v131, %v134
    %vm136 = vcmp.lt.s32.totalorder %v135, 0
    %v137 = vsub.s32 0, %v135
    %v138 = vsel %vm136, %v137, %v135
    %v139 = vclz %v138
    %v140 = vsub.s32 %v139, 2
    %vm141 = vcmp.gt.s32.totalorder 0, %v140
    %v142 = vsel %vm141, 0, %v140
    %v143 = vsub.s32 32, %v142
    %v144 = vshll.u32 %v135, %v142
    %v145 = vshrl.u32 %v127, %v143
    %v146 = vor.u32 %v144, %v145
    %v147 = vsub.s32 4294967266, %v142
    %v148 = vadd.s32 %v147, 127
    %v149 = vshll.u32 %v148, 23
    %v150 = vor.u32 4788187, %v149
    %v151 = vand.u32 2147483647, %v150
    %v153 = vcvt.s32.f32 %v146
    %v154 = vmul.f32 %v153, %v151
    %v155 = vxor.u32 %v154, 2147483648
    %v156 = vsel %vm35, %v155, %v154
    %v157 = vsub.s32 4, %v133
    %v158 = vsel %vm35, %v157, %v133
    %v159 = vsel %vm34, %v32, %v156
    %v160 = vsel %vm34, 0, %v158
    %v161 = vmul.f32 %v159, %v159
    %v162 = vmul.f32 %v161, -0.001358992
    %v163 = vadd.f32 %v162, 0.041655596
    %v164 = vmul.f32 %v161, %v163
    %v165 = vadd.f32 %v164, -0.4999988
    %v166 = vmul.f32 %v161, %v165
    %v167 = vadd.f32 1.0, %v166
    %v168 = vmul.f32 %v159, %v159
    %v169 = vmul.f32 %v168, -0.00019511016
    %v170 = vadd.f32 %v169, 0.008332121
    %v171 = vmul.f32 %v168, %v170
    %v172 = vadd.f32 %v171, -0.16666654
    %v173 = vmul.f32 %v168, %v172
    %v174 = vadd.f32 %v173, 1.0
    %v175 = vmul.f32 %v174, %v159
    %vm176 = vweird.f32 %v32
    %v177 = vand.u32 %v160, 3
    %vm178 = vcmp.lt.s32.totalorder %v177, 2
    %vm179 = vcmp.eq.s32.totalorder %v177, 0
    %v180 = vxor.u32 %v175, 2147483648
    %v181 = vsel %vm179, %v167, %v180
    %vm182 = vcmp.eq.s32.totalorder %v177, 2
    %v183 = vxor.u32 %v167, 2147483648
    %v184 = vsel %vm182, %v183, %v175
    %v185 = vsel %vm178, %v181, %v184
    %v186 = vsel %vm176, nan, %v185
    %v187 = vpack.c.bf16 %v186, %v186
    %v188 = vand.u32 2147483647, %v32
    %vm189 = vcmp.le.f32.partialorder %v188, 0.7853982
    %vm190 = vcmp.lt.s32.totalorder %v32, 0
    %v191 = vand.u32 %v32, 2139095040
    %v192 = vshrl.u32 %v191, 23
    %v193 = vsub.s32 %v192, 127
    %v194 = vand.u32 2147483647, %v32
    %v195 = vand.u32 %v194, 8388607
    %v196 = vor.u32 %v195, 8388608
    %v197 = vsub.s32 0, %v196
    %v198 = vadd.s32 %v193, 1
    %vm199 = vcmp.gt.s32.totalorder %v198, 0
    %v200 = vsel %vm199, %v198, 0
    %v201 = vshrl.u32 %v200, 5
    %v202 = vand.u32 %v200, 31
    %v203 = vsub.s32 32, %v202
    %v204 = vshrl.u32 683565275, %v203
    %v205 = vshll.u32 683565275, %v202
    %v206 = vshrl.u32 2475754826, %v203
    %v207 = vor.u32 %v205, %v206
    %v208 = vshll.u32 2475754826, %v202
    %v209 = vshrl.u32 2131351028, %v203
    %v210 = vor.u32 %v208, %v209
    %v211 = vshll.u32 2131351028, %v202
    %v212 = vshrl.u32 2102212464, %v203
    %v213 = vor.u32 %v211, %v212
    %v214 = vshll.u32 2102212464, %v202
    %v215 = vshrl.u32 920167782, %v203
    %v216 = vor.u32 %v214, %v215
    %v217 = vshll.u32 920167782, %v202
    %v218 = vshrl.u32 1326507024, %v203
    %v219 = vor.u32 %v217, %v218
    %vm220 = vcmp.lt.s32.totalorder %v201, 1
    %vm221 = vcmp.lt.s32.totalorder %v201, 2
    %vm222 = vcmp.lt.s32.totalorder %v201, 3
    %vm223 = vcmp.lt.s32.totalorder %v201, 4
    %v224 = vsel %vm220, %v204, %v207
    %v225 = vsel %vm223, %v213, 2102212464
    %v226 = vsel %vm222, %v210, %v225
    %v227 = vsel %vm221, %v224, %v226
    %v228 = vsel %vm220, %v207, %v210
    %v229 = vsel %vm223, %v216, 920167782
    %v230 = vsel %vm222, %v213, %v229
    %v231 = vsel %vm221, %v228, %v230
    %v232 = vsel %vm220, %v210, %v213
    %v233 = vsel %vm223, %v219, 1326507024
    %v234 = vsel %vm222, %v216, %v233
    %v235 = vsel %vm221, %v232, %v234
    %v236 = vshll.u32 %v196, 8
    %v237 = vand.u32 %v236, 65535
    %v238 = vshrl.u32 %v236, 16
    %v239 = vand.u32 %v235, 65535
    %v240 = vshrl.u32 %v235, 16
    %v241 = vmul.u32 %v237, %v239
    %v242 = vmul.u32 %v237, %v240
    %v243 = vmul.u32 %v238, %v239
    %v244 = vmul.u32 %v238, %v240
    %v245 = vshll.u32 %v242, 16
    %v246 = vshrl.u32 %v242, 16
    %v247 = vshll.u32 %v243, 16
    %v248 = vshrl.u32 %v243, 16
    %vm249 = vc.u32 %v241, %v245
    %v250 = vsel %vm249, 1, 0
    %v251 = vadd.s32 %v241, %v245
    %v252 = vadd.s32 %v244, %v250
    %vm253 = vc.u32 %v251, %v247
    %v254 = vsel %vm253, 1, 0
    %v255 = vadd.s32 %v251, %v247
    %v256 = vadd.s32 %v252, %v254
    %v257 = vadd.s32 %v256, %v246
    %v258 = vadd.s32 %v257, %v248
    %v259 = vand.u32 %v236, 65535
    %v260 = vshrl.u32 %v236, 16
    %v261 = vand.u32 %v231, 65535
    %v262 = vshrl.u32 %v231, 16
    %v263 = vmul.u32 %v259, %v261
    %v264 = vmul.u32 %v259, %v262
    %v265 = vmul.u32 %v260, %v261
    %v266 = vmul.u32 %v260, %v262
    %v267 = vshll.u32 %v264, 16
    %v268 = vshrl.u32 %v264, 16
    %v269 = vshll.u32 %v265, 16
    %v270 = vshrl.u32 %v265, 16
    %vm271 = vc.u32 %v263, %v267
    %v272 = vsel %vm271, 1, 0
    %v273 = vadd.s32 %v263, %v267
    %v274 = vadd.s32 %v266, %v272
    %vm275 = vc.u32 %v273, %v269
    %v276 = vsel %vm275, 1, 0
    %v277 = vadd.s32 %v273, %v269
    %v278 = vadd.s32 %v274, %v276
    %v279 = vadd.s32 %v278, %v268
    %v280 = vadd.s32 %v279, %v270
    %v281 = vmul.u32 %v236, %v227
    %v282 = vadd.s32 %v258, %v277
    %vm283 = vc.u32 %v258, %v277
    %v284 = vadd.s32 %v280, 1
    %v285 = vsel %vm283, %v284, %v280
    %v286 = vadd.s32 %v281, %v285
    %v287 = vadd.s32 %v286, 536870912
    %v288 = vshrl.u32 %v287, 30
    %v289 = vshll.u32 %v288, 30
    %v290 = vsub.s32 %v286, %v289
    %vm291 = vcmp.lt.s32.totalorder %v290, 0
    %v292 = vsub.s32 0, %v290
    %v293 = vsel %vm291, %v292, %v290
    %v294 = vclz %v293
    %v295 = vsub.s32 %v294, 2
    %vm296 = vcmp.gt.s32.totalorder 0, %v295
    %v297 = vsel %vm296, 0, %v295
    %v298 = vsub.s32 32, %v297
    %v299 = vshll.u32 %v290, %v297
    %v300 = vshrl.u32 %v282, %v298
    %v301 = vor.u32 %v299, %v300
    %v302 = vsub.s32 4294967266, %v297
    %v303 = vadd.s32 %v302, 127
    %v304 = vshll.u32 %v303, 23
    %v305 = vor.u32 4788187, %v304
    %v306 = vand.u32 2147483647, %v305
    %v308 = vcvt.s32.f32 %v301
    %v309 = vmul.f32 %v308, %v306
    %v310 = vxor.u32 %v309, 2147483648
    %v311 = vsel %vm190, %v310, %v309
    %v312 = vsub.s32 4, %v288
    %v313 = vsel %vm190, %v312, %v288
    %v314 = vsel %vm189, %v32, %v311
    %v315 = vsel %vm189, 0, %v313
    %v316 = vmul.f32 %v314, %v314
    %v317 = vmul.f32 %v316, -0.001358992
    %v318 = vadd.f32 %v317, 0.041655596
    %v319 = vmul.f32 %v316, %v318
    %v320 = vadd.f32 %v319, -0.4999988
    %v321 = vmul.f32 %v316, %v320
    %v322 = vadd.f32 1.0, %v321
    %v323 = vmul.f32 %v314, %v314
    %v324 = vmul.f32 %v323, -0.00019511016
    %v325 = vadd.f32 %v324, 0.008332121
    %v326 = vmul.f32 %v323, %v325
    %v327 = vadd.f32 %v326, -0.16666654
    %v328 = vmul.f32 %v323, %v327
    %v329 = vadd.f32 %v328, 1.0
    %v330 = vmul.f32 %v329, %v314
    %vm331 = vweird.f32 %v32
    %v332 = vadd.s32 %v315, 3
    %v333 = vand.u32 %v332, 3
    %vm334 = vcmp.lt.s32.totalorder %v333, 2
    %vm335 = vcmp.eq.s32.totalorder %v333, 0
    %v336 = vxor.u32 %v330, 2147483648
    %v337 = vsel %vm335, %v322, %v336
    %vm338 = vcmp.eq.s32.totalorder %v333, 2
    %v339 = vxor.u32 %v322, 2147483648
    %v340 = vsel %vm338, %v339, %v330
    %v341 = vsel %vm334, %v337, %v340
    %v342 = vsel %vm331, nan, %v341
    %v343 = vpack.c.bf16 %v342, %v342
    %v344 = vld [vmem:[%s2] sm:$0xf]
    %v345 = vld [vmem:[%s2 + $0x4] sm:$0xf]
    %v346 = vld [vmem:[%s2 + $0x8] sm:$0xf]
    %v347 = vld [vmem:[%s2 + $0xc] sm:$0xf]
    %v348 = vld [vmem:[%s2 + $0x10] sm:$0xf]
    %v349 = vld [vmem:[%s2 + $0x14] sm:$0xf]
    %v350 = vld [vmem:[%s2 + $0x18] sm:$0xf]
    %v351 = vld [vmem:[%s2 + $0x1c] sm:$0xf]
    %v352 = vld [vmem:[%s2 + $0x20] sm:$0xf]
    %v353 = vld [vmem:[%s2 + $0x24] sm:$0xf]
    %v354 = vld [vmem:[%s2 + $0x28] sm:$0xf]
    %v355 = vld [vmem:[%s2 + $0x2c] sm:$0xf]
    %v356 = vld [vmem:[%s2 + $0x30] sm:$0xf]
    %v357 = vld [vmem:[%s2 + $0x34] sm:$0xf]
    %v358 = vld [vmem:[%s2 + $0x38] sm:$0xf]
    %v359 = vld [vmem:[%s2 + $0x3c] sm:$0xf]
    %v360 = vld [vmem:[%s2 + $0x40] sm:$0xf]
    %v361 = vld [vmem:[%s2 + $0x44] sm:$0xf]
    %v362 = vld [vmem:[%s2 + $0x48] sm:$0xf]
    %v363 = vld [vmem:[%s2 + $0x4c] sm:$0xf]
    %v364 = vld [vmem:[%s2 + $0x50] sm:$0xf]
    %v365 = vld [vmem:[%s2 + $0x54] sm:$0xf]
    %v366 = vld [vmem:[%s2 + $0x58] sm:$0xf]
    %v367 = vld [vmem:[%s2 + $0x5c] sm:$0xf]
    %v368 = vld [vmem:[%s2 + $0x60] sm:$0xf]
    %v369 = vld [vmem:[%s2 + $0x64] sm:$0xf]
    %v370 = vld [vmem:[%s2 + $0x68] sm:$0xf]
    %v371 = vld [vmem:[%s2 + $0x6c] sm:$0xf]
    %v372 = vld [vmem:[%s2 + $0x70] sm:$0xf]
    %v373 = vld [vmem:[%s2 + $0x74] sm:$0xf]
    %v374 = vld [vmem:[%s2 + $0x78] sm:$0xf]
    %v375 = vld [vmem:[%s2 + $0x7c] sm:$0xf]
    %v392 = vunpack.c.l.b16 %v360
    %v393 = vunpack.c.l.b16 %v361
    %v394 = vunpack.c.l.b16 %v362
    %v395 = vunpack.c.l.b16 %v363
    %v396 = vunpack.c.l.b16 %v364
    %v397 = vunpack.c.l.b16 %v365
    %v398 = vunpack.c.l.b16 %v366
    %v399 = vunpack.c.l.b16 %v367
    %v400 = vunpack.c.l.b16 %v368
    %v401 = vunpack.c.l.b16 %v369
    %v402 = vunpack.c.l.b16 %v370
    %v403 = vunpack.c.l.b16 %v371
    %v404 = vunpack.c.l.b16 %v372
    %v405 = vunpack.c.l.b16 %v373
    %v406 = vunpack.c.l.b16 %v374
    %v407 = vunpack.c.l.b16 %v375
    %v408 = vpack.c.b16 %v393, %v392
    %v409 = vpack.c.b16 %v395, %v394
    %v410 = vpack.c.b16 %v397, %v396
    %v411 = vpack.c.b16 %v399, %v398
    %v412 = vpack.c.b16 %v401, %v400
    %v413 = vpack.c.b16 %v403, %v402
    %v414 = vpack.c.b16 %v405, %v404
    %v415 = vpack.c.b16 %v407, %v406
    %424 = vmatpush.bf16.msra.mxu0 %v415
    %425 = vmatpush.bf16.msra.mxu0 %v414
    %426 = vmatpush.bf16.msra.mxu0 %v413
    %427 = vmatpush.bf16.msra.mxu0 %v412
    %428 = vmatpush.bf16.msra.mxu0 %v411
    %429 = vmatpush.bf16.msra.mxu0 %v410
    %430 = vmatpush.bf16.msra.mxu0 %v409
    %431 = vmatpush.bf16.msra.mxu0 %v408
    %432 = vmatmul.bf16.gmra.mxu0 %v343
    %v433 = vpop.f32.mrf.mxu0
    %v434 = vadd.f32 0.0, %v433
    %v435 = vpop.f32.mrf.mxu0
    %436 = vdwg.mxu0
    %v453 = vunpack.c.l.b16 %v344
    %v454 = vunpack.c.l.b16 %v345
    %v455 = vunpack.c.l.b16 %v346
    %v456 = vunpack.c.l.b16 %v347
    %v457 = vunpack.c.l.b16 %v348
    %v458 = vunpack.c.l.b16 %v349
    %v459 = vunpack.c.l.b16 %v350
    %v460 = vunpack.c.l.b16 %v351
    %v461 = vunpack.c.l.b16 %v352
    %v462 = vunpack.c.l.b16 %v353
    %v463 = vunpack.c.l.b16 %v354
    %v464 = vunpack.c.l.b16 %v355
    %v465 = vunpack.c.l.b16 %v356
    %v466 = vunpack.c.l.b16 %v357
    %v467 = vunpack.c.l.b16 %v358
    %v468 = vunpack.c.l.b16 %v359
    %v469 = vpack.c.b16 %v454, %v453
    %v470 = vpack.c.b16 %v456, %v455
    %v471 = vpack.c.b16 %v458, %v457
    %v472 = vpack.c.b16 %v460, %v459
    %v473 = vpack.c.b16 %v462, %v461
    %v474 = vpack.c.b16 %v464, %v463
    %v475 = vpack.c.b16 %v466, %v465
    %v476 = vpack.c.b16 %v468, %v467
    %485 = vmatpush.bf16.msra.mxu0 %v476
    %486 = vmatpush.bf16.msra.mxu0 %v475
    %487 = vmatpush.bf16.msra.mxu0 %v474
    %488 = vmatpush.bf16.msra.mxu0 %v473
    %489 = vmatpush.bf16.msra.mxu0 %v472
    %490 = vmatpush.bf16.msra.mxu0 %v471
    %491 = vmatpush.bf16.msra.mxu0 %v470
    %492 = vmatpush.bf16.msra.mxu0 %v469
    %493 = vmatmul.bf16.gmra.mxu0 %v187
    %v494 = vpop.f32.mrf.mxu0
    %v495 = vadd.f32 %v434, %v494
    %v496 = vpop.f32.mrf.mxu0
    %497 = vdwg.mxu0
    %v498 = vld [vmem:[%s4] sm:$0x1]
    %v499 = vperm.slane %v498, 0
    %v500 = vadd.f32 %v495, %v499
    %v501 = vxor.u32 %v500, 2147483648
    %v502 = vmul.f32 %v501, 1.442695
    %v503 = vpow.pop %v502
    %v504 = vadd.f32 %v503, 1.0
    %v505 = vrcp.pop %v504
    %v506 = vmul.f32 %v504, %v505
    %v507 = vsub.f32 1.0, %v506
    %v508 = vmul.f32 %v505, %v507
    %v509 = vadd.f32 %v505, %v508
    %vm510 = vweird.f32 %v504
    %vm511 = vweird.f32 %v505
    %vm512 = vmor %vm510, %vm511
    %v513 = vsel %vm512, %v505, %v509
    %v514 = vand.u32 2147483647, %v504
    %vm515 = vcmp.eq.f32.partialorder %v514, 8.507059e+37
    %v516 = vand.u32 %v504, 2147483648
    %v517 = vor.u32 1.1754944e-38, %v516
    %v518 = vsel %vm515, %v517, %v513
    %v519 = vmul.f32 1.0, %v518
    %v520 = vmul.f32 %v500, %v519
    %v521 = vpack.c.bf16 %v520, %v520
    %v522 = vld [vmem:[%s3] sm:$0xf]
    %v523 = vld [vmem:[%s3 + $0x4] sm:$0xf]
    %v524 = vld [vmem:[%s3 + $0x8] sm:$0xf]
    %v525 = vld [vmem:[%s3 + $0xc] sm:$0xf]
    %v526 = vld [vmem:[%s4 + $0x1] sm:$0x1]
    %v527 = vperm.slane %v526, 0
    %v532 = vunpack.c.l.b16 %v522
    %v533 = vunpack.c.l.b16 %v523
    %v534 = vunpack.c.l.b16 %v524
    %v535 = vunpack.c.l.b16 %v525
    %v536 = vpack.c.b16 %v533, %v532
    %v537 = vpack.c.b16 %v535, %v534
    %vm540 = vcmask 261120
    %v542 = vsel %vm540, %v521, 0
    %544 = vmatpush.bf16.msra.mxu0 0
    %545 = vmatpush.bf16.msra.mxu0 0
    %546 = vmatpush.bf16.msra.mxu0 0
    %547 = vmatpush.bf16.msra.mxu0 0
    %548 = vmatpush.bf16.msra.mxu0 0
    %549 = vmatpush.bf16.msra.mxu0 0
    %550 = vmatpush.bf16.msra.mxu0 %v537
    %551 = vmatpush.bf16.msra.mxu0 %v536
    %552 = vmatmul.bf16.gmra.mxu0 %v542
    %v553 = vpop.f32.mrf.mxu0
    %v554 = vadd.f32 %v527, %v553
    %v555 = vpop.f32.mrf.mxu0
    %556 = vdwg.mxu0
    %vm557 = vcmask 254976
    %558 = vst.msk [vmem:[#allocation2] sm:$0x3] %vm557, %v554
    // Predicated region
    $region22: #{timestep_embedder.1} parent=1 // pred_check
      _
    $region23: #{timestep_embedder.1} parent=1 // pred_check_branch
      %560 = sbr.rel (0) target = $region25
    $region24: #{timestep_embedder.1} parent=1 // pred_region
      %562 = vsyncadd [#allocation3], 0
      %s564 = sshll.u32 [#allocation2], 4
      %s565 = int_to_ptr.vmem [resolvable:$true] %s564
      %s566 = sshll.u32 %s5, 4
      %s567 = int_to_ptr.hbm [resolvable:$true] %s566
      %569 = dma.vmem_to_hbm [thread:$0]  %s565, 32, %s567, [#allocation3]
    $region25: #{timestep_embedder.1} parent=1 // pred_fallthru
      _
    // Predicated region
    $region26: #{timestep_embedder.1} parent=1 // pred_check
      _
    $region27: #{timestep_embedder.1} parent=1 // pred_check_branch
      %571 = sbr.rel (0) target = $region29
    $region28: #{timestep_embedder.1} parent=1 // pred_region
      %573 = dma.done [#allocation3], 32
    $region29: #{timestep_embedder.1} parent=1 // pred_fallthru
      _
    %574 = vsyncpa [#allocation3], 1

</llo_original>
